<compile_context>
chip_gen: v5e
topology: v5e:2x2
jax: 0.10.0
libtpu: 0.0.40
codegen_flags: <defaults>
</compile_context>

<pallas_src>
import jax
import jax.numpy as jnp
from jax.experimental import pallas as pl
from jax.experimental.pallas import tpu as pltpu


def _mean_pool_head_kernel(x_ref, w_ref, b_ref, o_ref, acc_ref):
    # x_ref: (TB, TN, D) input tile; w_ref: (D, C_pad) f32 (already scaled by 1/N);
    # b_ref: (1, C_pad) f32; o_ref: (TB, C_pad); acc_ref: (TB, D) f32 scratch.
    n = pl.program_id(1)

    @pl.when(n == 0)
    def _():
        acc_ref[...] = jnp.zeros_like(acc_ref)

    # Partial sum over this sequence tile, accumulated in f32.
    acc_ref[...] += jnp.sum(x_ref[...].astype(jnp.float32), axis=1)

    @pl.when(n == pl.num_programs(1) - 1)
    def _():
        # 1/N is folded into w_ref, so this is already the mean-pooled head.
        out = jnp.dot(acc_ref[...], w_ref[...], preferred_element_type=jnp.float32)
        o_ref[...] = (out + b_ref[...]).astype(o_ref.dtype)


def mean_pooling_forward(x, weight, bias, *, tb=None, tn=None, vmem_limit_bytes=None):
    """x: (B, N, D); weight: (C, D) PyTorch-style; bias: (C,). Returns (B, C)."""
    B, N, D = x.shape
    C = weight.shape[0]
    itemsize = jnp.dtype(x.dtype).itemsize

    # ---- Tile selection (batch tile TB, sequence tile TN) ----
    if tb is None:
        tb = 128
    if tb >= B:
        tb = B
    else:
        tb = max(8, (tb // 8) * 8)          # sublane-friendly when tiling B

    if tn is None:
        # Keep double-buffered x tiles under ~16 MiB of VMEM (safe on all gens).
        budget = 16 * 1024 * 1024
        tn = budget // max(1, 2 * tb * D * itemsize)
        tn = min(max(tn, 8), 2048)
    if tn >= N:
        tn = N
    else:
        tn = max(8, (tn // 8) * 8)          # (8,128) sublane constraint on (TN, D)

    # ---- Pad B / N up to tile multiples (zero rows don't change the sum) ----
    B_pad = pl.cdiv(B, tb) * tb
    N_pad = pl.cdiv(N, tn) * tn
    if (B_pad, N_pad) != (B, N):
        x = jnp.pad(x, ((0, B_pad - B), (0, N_pad - N), (0, 0)))

    # ---- Head params: fold 1/N, transpose to (D, C), pad C lane-dense ----
    C_pad = ((C + 127) // 128) * 128
    inv_n = 1.0 / float(N)                  # true N (before padding)
    w_scaled = weight.astype(jnp.float32).T * inv_n            # (D, C)
    w_pad = jnp.zeros((D, C_pad), jnp.float32).at[:, :C].set(w_scaled)
    b_pad = jnp.zeros((1, C_pad), jnp.float32).at[0, :C].set(bias.astype(jnp.float32))

    # ---- VMEM budget hint (explicit, headroom-safe even on v7x's 64 MiB) ----
    x_tile_bytes = tb * tn * D * itemsize
    fixed_bytes = (D * C_pad + C_pad + tb * D + tb * C_pad) * 4
    if vmem_limit_bytes is None:
        est = 2 * x_tile_bytes + 4 * fixed_bytes + (4 << 20)
        vmem_limit_bytes = min(max(est, 32 << 20), 48 << 20)

    grid = (B_pad // tb, N_pad // tn)

    out = pl.pallas_call(
        _mean_pool_head_kernel,
        out_shape=jax.ShapeDtypeStruct((B_pad, C_pad), x.dtype),
        grid_spec=pltpu.PrefetchScalarGridSpec(
            num_scalar_prefetch=0,
            grid=grid,
            in_specs=[
                pl.BlockSpec((tb, tn, D), lambda b, n: (b, n, 0)),  # streamed x
                pl.BlockSpec((D, C_pad), lambda b, n: (0, 0)),      # resident weight
                pl.BlockSpec((1, C_pad), lambda b, n: (0, 0)),      # resident bias
            ],
            out_specs=pl.BlockSpec((tb, C_pad), lambda b, n: (b, 0)),
            scratch_shapes=[pltpu.VMEM((tb, D), jnp.float32)],
        ),
        compiler_params=pltpu.CompilerParams(
            dimension_semantics=("parallel", "arbitrary"),
            vmem_limit_bytes=int(vmem_limit_bytes),
        ),
    )(x, w_pad, b_pad)

    return out[:B, :C]


def init_mean_pooling_params(key, input_dim, n_classes, dtype=jnp.float32):
    """Deterministic init matching initialize_weights: xavier_normal_ weight, zero bias."""
    std = (2.0 / (input_dim + n_classes)) ** 0.5
    weight = std * jax.random.normal(key, (n_classes, input_dim), dtype=dtype)
    bias = jnp.zeros((n_classes,), dtype=dtype)
    return weight, bias


if __name__ == "__main__":
    key = jax.random.PRNGKey(0)
    k_x, k_w, k_x2, k_w2 = jax.random.split(key, 4)

    # Case 1: small shapes consistent with the module (single grid step).
    B, N, D, C = 2, 8, 32, 1
    x = jax.random.normal(k_x, (B, N, D), dtype=jnp.float32)
    weight, bias = init_mean_pooling_params(k_w, input_dim=D, n_classes=C)

    out = mean_pooling_forward(x, weight, bias)
    out = jax.block_until_ready(out)
    ref = jnp.mean(x, axis=1) @ weight.T + bias
    assert out.shape == (B, C)
    assert jnp.allclose(out, ref, atol=1e-4, rtol=1e-4)

    # Case 2: exercises the (B, N) grid, accumulation across N tiles, and
    # ragged-N zero padding (N=200 with TN=64 -> 4 sequence tiles).
    B2, N2, D2, C2 = 4, 200, 128, 3
    x2 = jax.random.normal(k_x2, (B2, N2, D2), dtype=jnp.float32)
    weight2, bias2 = init_mean_pooling_params(k_w2, input_dim=D2, n_classes=C2)

    out2 = mean_pooling_forward(x2, weight2, bias2, tn=64)
    out2 = jax.block_until_ready(out2)
    ref2 = jnp.mean(x2, axis=1) @ weight2.T + bias2
    assert out2.shape == (B2, C2)
    assert jnp.allclose(out2, ref2, atol=1e-4, rtol=1e-4)

    print("KERNEL_OK")
</pallas_src>

<mosaic_0001>
module attributes {stable_mosaic.version = 11 : i64} {
  func.func @_mean_pool_head_kernel(%arg0: i32, %arg1: i32, %arg2: memref<2x8x32xf32, #tpu.memory_space<vmem>>, %arg3: memref<32x128xf32, #tpu.memory_space<vmem>>, %arg4: memref<1x128xf32, #tpu.memory_space<vmem>>, %arg5: memref<2x128xf32, #tpu.memory_space<vmem>>, %arg6: memref<2x32xf32, #tpu.memory_space<vmem>>) attributes {dimension_semantics = [#tpu.dimension_semantics<parallel>, #tpu.dimension_semantics<arbitrary>], iteration_bounds = array<i64: 1, 1>, scalar_prefetch = 0 : i64, scratch_operands = 1 : i64, tpu.core_type = #tpu.core_type<tc>, window_params = [{transform_indices = @transform_0, window_bounds = array<i64: 2, 8, 32>}, {pipeline_mode = #tpu.pipeline_mode<synchronous>, transform_indices = @transform_1, window_bounds = array<i64: 32, 128>}, {pipeline_mode = #tpu.pipeline_mode<synchronous>, transform_indices = @transform_2, window_bounds = array<i64: 1, 128>}, {transform_indices = @transform_3, window_bounds = array<i64: 2, 128>}]} {
    %c0_i32 = arith.constant 0 : i32
    %0 = arith.cmpi eq, %arg1, %c0_i32 : i32
    %1 = arith.extui %0 : i1 to i32
    %c0_i32_0 = arith.constant 0 : i32
    %2 = arith.cmpi ne, %1, %c0_i32_0 : i32
    scf.if %2 {
      %cst_9 = arith.constant 0.000000e+00 : f32
      %11 = vector.broadcast %cst_9 : f32 to vector<2x32xf32>
      %c0_10 = arith.constant 0 : index
      %c0_11 = arith.constant 0 : index
      %12 = vector.load %arg6[%c0_10, %c0_11] : memref<2x32xf32, #tpu.memory_space<vmem>>, vector<2x32xf32>
      tpu.vector_store %arg6[%c0_10, %c0_11], %11 {strides = array<i32>} : memref<2x32xf32, #tpu.memory_space<vmem>>, vector<2x32xf32>,
    } else {
    }
    %c0 = arith.constant 0 : index
    %c0_1 = arith.constant 0 : index
    %3 = vector.load %arg6[%c0, %c0_1] : memref<2x32xf32, #tpu.memory_space<vmem>>, vector<2x32xf32>
    %c0_2 = arith.constant 0 : index
    %c0_3 = arith.constant 0 : index
    %c0_4 = arith.constant 0 : index
    %4 = vector.load %arg2[%c0_2, %c0_3, %c0_4] : memref<2x8x32xf32, #tpu.memory_space<vmem>>, vector<2x8x32xf32>
    %cst = arith.constant dense<0.000000e+00> : vector<2x32xf32>
    %5 = vector.multi_reduction <add>, %4, %cst [1] : vector<2x8x32xf32> to vector<2x32xf32>
    %6 = arith.addf %3, %5 : vector<2x32xf32>
    %c0_5 = arith.constant 0 : index
    %c0_6 = arith.constant 0 : index
    %7 = vector.load %arg6[%c0_5, %c0_6] : memref<2x32xf32, #tpu.memory_space<vmem>>, vector<2x32xf32>
    tpu.vector_store %arg6[%c0_5, %c0_6], %6 {strides = array<i32>} : memref<2x32xf32, #tpu.memory_space<vmem>>, vector<2x32xf32>,
    %c0_i32_7 = arith.constant 0 : i32
    %8 = arith.cmpi eq, %arg1, %c0_i32_7 : i32
    %9 = arith.extui %8 : i1 to i32
    %c0_i32_8 = arith.constant 0 : i32
    %10 = arith.cmpi ne, %9, %c0_i32_8 : i32
    scf.if %10 {
      %c0_9 = arith.constant 0 : index
      %c0_10 = arith.constant 0 : index
      %11 = vector.load %arg6[%c0_9, %c0_10] : memref<2x32xf32, #tpu.memory_space<vmem>>, vector<2x32xf32>
      %c0_11 = arith.constant 0 : index
      %c0_12 = arith.constant 0 : index
      %12 = vector.load %arg3[%c0_11, %c0_12] : memref<32x128xf32, #tpu.memory_space<vmem>>, vector<32x128xf32>
      %cst_13 = arith.constant dense<0.000000e+00> : vector<2x128xf32>
      %13 = tpu.matmul %11, %12, %cst_13 {dimension_numbers = #tpu.dot_dimension_numbers<[1], [0], [0], [1], [0, 0, 1, 1], [], []>} : vector<2x32xf32>, vector<32x128xf32>, vector<2x128xf32> -> vector<2x128xf32>
      %c0_14 = arith.constant 0 : index
      %c0_15 = arith.constant 0 : index
      %14 = vector.load %arg4[%c0_14, %c0_15] : memref<1x128xf32, #tpu.memory_space<vmem>>, vector<1x128xf32>
      %15 = vector.broadcast %14 : vector<1x128xf32> to vector<2x128xf32>
      %16 = arith.addf %13, %15 : vector<2x128xf32>
      %c0_16 = arith.constant 0 : index
      %c0_17 = arith.constant 0 : index
      %17 = vector.load %arg5[%c0_16, %c0_17] : memref<2x128xf32, #tpu.memory_space<vmem>>, vector<2x128xf32>
      tpu.vector_store %arg5[%c0_16, %c0_17], %16 {strides = array<i32>} : memref<2x128xf32, #tpu.memory_space<vmem>>, vector<2x128xf32>,
    } else {
    }
    return
  }
  func.func @transform_0(%arg0: i32, %arg1: i32) -> (i32, i32, i32) {
    %c0_i32 = arith.constant 0 : i32
    %c0_i32_0 = arith.constant 0 : i32
    return %arg0, %arg1, %c0_i32 : i32, i32, i32
  }
  func.func @transform_1(%arg0: i32, %arg1: i32) -> (i32, i32) {
    %c0_i32 = arith.constant 0 : i32
    %c0_i32_0 = arith.constant 0 : i32
    %c0_i32_1 = arith.constant 0 : i32
    return %c0_i32, %c0_i32_0 : i32, i32
  }
  func.func @transform_2(%arg0: i32, %arg1: i32) -> (i32, i32) {
    %c0_i32 = arith.constant 0 : i32
    %c0_i32_0 = arith.constant 0 : i32
    %c0_i32_1 = arith.constant 0 : i32
    return %c0_i32, %c0_i32_0 : i32, i32
  }
  func.func @transform_3(%arg0: i32, %arg1: i32) -> (i32, i32) {
    %c0_i32 = arith.constant 0 : i32
    %c0_i32_0 = arith.constant 0 : i32
    return %arg0, %c0_i32 : i32, i32
  }
}

</mosaic_0001>

<llo_original>
// kernel: tpu_custom_call.1
$region0: #{tpu_custom_call.1}
  #allocation0 [shape = 'u32[]', space=smem, size = 0x4, offset = 0x4, fixed_abs, tag = 'smem constant byte address 0x4 - core index']
  #allocation1 [shape = 'u32[72,128]{1,0:T(1,128)}', space=vmem, size = 0x9000, scoped, tag = 'internal scratch']
  #allocation2 [shape = 'f32[2,32]{1,0:T(2,128)}', space=vmem, size = 0x400, scoped, tag = 'scratch operand']
  %s0 = inlined_call_operand.hbm [shape: f32[2,8,32], index: 0, kind: input, shape index: {}]
  %s1 = inlined_call_operand.hbm [shape: f32[32,128], index: 1, kind: input, shape index: {}]
  %s2 = inlined_call_operand.vmem [shape: f32[1,128], index: 2, kind: input, shape index: {}]
  %s3 = inlined_call_operand.hbm [shape: f32[2,128], index: 3, kind: output, shape index: {}]
  %s4 = sld [smem:[#allocation0]]
  $region38: #{tpu_custom_call.1} parent=0
    _
  %s6 = ssub.s32 1, %s4
  %s7 = scalar_select 0, %s6, %s4
  $region1: #{tpu_custom_call.1} parent=0
    #allocation3 [shape = 'u8[8192]{0}', space=vmem, size = 0x2000, scoped, tag = 'input window, operand 0, single buffered']
    #allocation4 [shape = 's32[1]{0}', space=sflag, size = 0x4, scoped, tag = 'scoped memory for tpu_custom_call.1']
    #allocation5 [shape = 's32[1]{0}', space=sflag, size = 0x4, scoped, tag = 'scoped memory for tpu_custom_call.1']
    #allocation6 [shape = 'u8[16384]{0}', space=vmem, size = 0x4000, scoped, tag = 'input window, operand 1, single buffered']
    #allocation7 [shape = 's32[1]{0}', space=sflag, size = 0x4, scoped, tag = 'scoped memory for tpu_custom_call.1']
    #allocation8 [shape = 'u8[1024]{0}', space=vmem, size = 0x400, scoped, tag = 'output window, operand 0, single buffered']
    %8 = vsyncpa [#allocation4], 0
    %9 = vsyncpa [#allocation7], 0
    %10 = vsyncpa [#allocation5], 0
    // Predicated region
    $region2: #{tpu_custom_call.1} parent=1 // pred_check
      _
    $region3: #{tpu_custom_call.1} parent=1 // pred_check_branch
      %12 = sbr.rel (0) target = $region5
    $region4: #{tpu_custom_call.1} parent=1 // pred_region
      %14 = vsyncadd [#allocation4], 0
      %s15 = sshll.u32 %s0, 4
      %s16 = int_to_ptr.hbm [resolvable:$true] %s15
      %s17 = sshll.u32 [#allocation3], 4
      %s18 = int_to_ptr.vmem [resolvable:$true] %s17
      %23 = dma.hbm_to_vmem [thread:$0]  %s16, 256, %s18, [#allocation4], 128, 128, 8
    $region5: #{tpu_custom_call.1} parent=1 // pred_fallthru
      _
    // Predicated region
    $region6: #{tpu_custom_call.1} parent=1 // pred_check
      _
    $region7: #{tpu_custom_call.1} parent=1 // pred_check_branch
      %25 = sbr.rel (0) target = $region9
    $region8: #{tpu_custom_call.1} parent=1 // pred_region
      %27 = vsyncadd [#allocation7], 0
      %s28 = sshll.u32 %s1, 4
      %s29 = int_to_ptr.hbm [resolvable:$true] %s28
      %s30 = sshll.u32 [#allocation6], 4
      %s31 = int_to_ptr.vmem [resolvable:$true] %s30
      %36 = dma.hbm_to_vmem [thread:$0]  %s29, 512, %s31, [#allocation7], 128, 128, 8
    $region9: #{tpu_custom_call.1} parent=1 // pred_fallthru
      _
    // Predicated region
    $region10: #{tpu_custom_call.1} parent=1 // pred_check
      _
    $region11: #{tpu_custom_call.1} parent=1 // pred_check_branch
      %38 = sbr.rel (0) target = $region13
    $region12: #{tpu_custom_call.1} parent=1 // pred_region
      _
    $region13: #{tpu_custom_call.1} parent=1 // pred_fallthru
      _
    // Predicated region
    $region14: #{tpu_custom_call.1} parent=1 // pred_check
      _
    $region15: #{tpu_custom_call.1} parent=1 // pred_check_branch
      %40 = sbr.rel (0) target = $region17
    $region16: #{tpu_custom_call.1} parent=1 // pred_region
      %42 = dma.done [#allocation4], 256
    $region17: #{tpu_custom_call.1} parent=1 // pred_fallthru
      _
    // Predicated region
    $region18: #{tpu_custom_call.1} parent=1 // pred_check
      _
    $region19: #{tpu_custom_call.1} parent=1 // pred_check_branch
      %44 = sbr.rel (0) target = $region21
    $region20: #{tpu_custom_call.1} parent=1 // pred_region
      %46 = dma.done [#allocation7], 512
    $region21: #{tpu_custom_call.1} parent=1 // pred_fallthru
      _
    %p47 = scmp.eq.s32.totalorder 0, 0
    // Predicated region
    $region22: #{tpu_custom_call.1} parent=1 // pred_check
      %p48 = pneg %p47
    $region23: #{tpu_custom_call.1} parent=1 // pred_check_branch
      %50 = sbr.rel (%p48) target = $region25
    $region24: #{tpu_custom_call.1} parent=1 // pred_region
      %vm51 = vcmask 254976
      %52 = vst.msk [vmem:[#allocation2] sm:$0x3] %vm51, 0.0
    $region25: #{tpu_custom_call.1} parent=1 // pred_fallthru
      _
    %v53 = vld [vmem:[#allocation2] sm:$0x3]
    %v54 = vld [vmem:[#allocation3] sm:$0xff]
    %v55 = vld [vmem:[#allocation3 + $0x8] sm:$0xff]
    %vm56 = vcmask 261120
    %v57 = vsel %vm56, %v54, 0.0
    %v58 = vrot.slane %v57, 4
    %v59 = vadd.f32 %v57, %v58
    %v60 = vrot.slane %v59, 2
    %v61 = vadd.f32 %v59, %v60
    %v62 = vrot.slane %v61, 1
    %v63 = vadd.f32 %v61, %v62
    %v64 = vsel %vm56, %v55, 0.0
    %v65 = vrot.slane %v64, 4
    %v66 = vadd.f32 %v64, %v65
    %v67 = vrot.slane %v66, 2
    %v68 = vadd.f32 %v66, %v67
    %v69 = vrot.slane %v68, 1
    %v70 = vadd.f32 %v68, %v69
    %vm73 = vcmask 1041409
    %v74 = vsel %vm73, %v70, %v63
    %v76 = vadd.f32 %v53, %v74
    %vm77 = vcmask 254976
    %78 = vst.msk [vmem:[#allocation2] sm:$0x3] %vm77, %v76
    // Predicated region
    $region26: #{tpu_custom_call.1} parent=1 // pred_check
      %p79 = pneg %p47
    $region27: #{tpu_custom_call.1} parent=1 // pred_check_branch
      %81 = sbr.rel (%p79) target = $region29
    $region28: #{tpu_custom_call.1} parent=1 // pred_region
      %v82 = vld [vmem:[#allocation2] sm:$0x3]
      %v83 = vld [vmem:[#allocation6] sm:$0xff]
      %v84 = vld [vmem:[#allocation6 + $0x8] sm:$0xff]
      %v85 = vld [vmem:[#allocation6 + $0x10] sm:$0xff]
      %v86 = vld [vmem:[#allocation6 + $0x18] sm:$0xff]
      %v87 = vld [vmem:[%s2] sm:$0x1]
      %v89 = vperm.slane %v87, 0
      %v92 = vsel %vm56, %v82, 0
      %94 = vmatpush.msra.mxu0 0.0
      %95 = vmatpush.msra.mxu0 0.0
      %96 = vmatpush.msra.mxu0 0.0
      %97 = vmatpush.msra.mxu0 0.0
      %98 = vmatpush.msra.mxu0 0.0
      %99 = vmatpush.msra.mxu0 0.0
      %100 = vmatpush.msra.mxu0 0.0
      %101 = vmatpush.msra.mxu0 0.0
      %102 = vmatpush.msra.mxu0 0.0
      %103 = vmatpush.msra.mxu0 0.0
      %104 = vmatpush.msra.mxu0 0.0
      %105 = vmatpush.msra.mxu0 0.0
      %106 = vmatpush.msra.mxu0 %v86
      %107 = vmatpush.msra.mxu0 %v85
      %108 = vmatpush.msra.mxu0 %v84
      %109 = vmatpush.msra.mxu0 %v83
      %110 = vmatmul.f32.gmra.mxu0 %v92
      %v111 = vpop.f32.mrf.mxu0
      %v112 = vadd.f32 %v89, %v111
      %113 = vdwg.mxu0
      %114 = vst [vmem:[#allocation8] sm:$0x3] %v112
    $region29: #{tpu_custom_call.1} parent=1 // pred_fallthru
      _
    // Predicated region
    $region30: #{tpu_custom_call.1} parent=1 // pred_check
      _
    $region31: #{tpu_custom_call.1} parent=1 // pred_check_branch
      %116 = sbr.rel (0) target = $region33
    $region32: #{tpu_custom_call.1} parent=1 // pred_region
      %118 = vsyncadd [#allocation5], 0
      %s120 = sshll.u32 [#allocation8], 4
      %s121 = int_to_ptr.vmem [resolvable:$true] %s120
      %s122 = sshll.u32 %s3, 4
      %s123 = int_to_ptr.hbm [resolvable:$true] %s122
      %125 = dma.vmem_to_hbm [thread:$0]  %s121, 32, %s123, [#allocation5]
    $region33: #{tpu_custom_call.1} parent=1 // pred_fallthru
      _
    // Predicated region
    $region34: #{tpu_custom_call.1} parent=1 // pred_check
      _
    $region35: #{tpu_custom_call.1} parent=1 // pred_check_branch
      %127 = sbr.rel (0) target = $region37
    $region36: #{tpu_custom_call.1} parent=1 // pred_region
      %129 = dma.done [#allocation5], 32
    $region37: #{tpu_custom_call.1} parent=1 // pred_fallthru
      _
    %130 = vsyncpa [#allocation4], 1
    %131 = vsyncpa [#allocation7], 1
    %132 = vsyncpa [#allocation5], 1

</llo_original>
